<compile_context>
chip_gen: v7x
topology: tpu7x:2x2x1
jax: 0.10.0
libtpu: 0.0.40
codegen_flags: <defaults>
</compile_context>

<pallas_src>
import jax
import jax.numpy as jnp
from jax.experimental import pallas as pl
from jax.experimental.pallas import tpu as pltpu


def _round_up(n, m):
    return ((n + m - 1) // m) * m


def _sigmoid(z):
    # f32 logistic: exp on the EUP, reciprocal is cheap; numerically fine
    # (z -> -inf gives 1/inf = 0, z -> +inf gives 1/(1+0) = 1).
    return 1.0 / (1.0 + jnp.exp(-z))


def decoder_kernel(x_ref, w1_ref, b1_ref, w2_ref, b2_ref, out_ref):
    # Layer 1: (TB, L) @ (L, Hp) on the MXU, bf16 operands, f32 accumulation.
    x = x_ref[...].astype(jnp.bfloat16)
    h = jnp.dot(x, w1_ref[...], preferred_element_type=jnp.float32)
    h = _sigmoid(h + b1_ref[...])            # b1 is (1, Hp) -> broadcasts over rows

    # Layer 2: (TB, Hp) @ (Hp, Op).  Cast activations to bf16 for the MXU only.
    o = jnp.dot(h.astype(jnp.bfloat16), w2_ref[...],
                preferred_element_type=jnp.float32)
    out_ref[...] = _sigmoid(o + b2_ref[...]).astype(out_ref.dtype)


def decoder_forward(x, w1, b1, w2, b2, *, block_b=256):
    """x: (B, latent); w1: (latent, hidden); b1: (hidden,) or (1, hidden);
       w2: (hidden, out); b2: (out,) or (1, out).  Returns (B, out) float32."""
    B, L = x.shape
    H = w1.shape[1]
    O = w2.shape[1]

    # Lane-pad hidden/output dims to multiples of 128; batch tile is a multiple
    # of 8 (f32 sublane); pad batch up to a multiple of the tile.
    Hp = _round_up(H, 128)
    Op = _round_up(O, 128)
    TB = block_b if B >= block_b else _round_up(B, 8)
    Bp = _round_up(B, TB)
    num_tiles = Bp // TB

    # Activations stay f32 (cast to bf16 inside the kernel); pad batch only if needed.
    xq = x.astype(jnp.float32)
    if Bp != B:
        xq = jnp.zeros((Bp, L), jnp.float32).at[:B].set(xq)

    # Weights as bf16 MXU operands (zero-padded); biases stay f32.
    w1p = jnp.zeros((L, Hp), jnp.bfloat16).at[:, :H].set(w1.astype(jnp.bfloat16))
    b1p = jnp.zeros((1, Hp), jnp.float32).at[:, :H].set(
        b1.reshape(1, -1).astype(jnp.float32))
    w2p = jnp.zeros((Hp, Op), jnp.bfloat16).at[:H, :O].set(w2.astype(jnp.bfloat16))
    b2p = jnp.zeros((1, Op), jnp.float32).at[:, :O].set(
        b2.reshape(1, -1).astype(jnp.float32))

    out_p = pl.pallas_call(
        decoder_kernel,
        out_shape=jax.ShapeDtypeStruct((Bp, Op), jnp.float32),
        grid=(num_tiles,),
        in_specs=[
            # Batch-tiled activation: double-buffered DMA across grid steps.
            pl.BlockSpec((TB, L), lambda i: (i, 0)),
            # Weights / biases: constant index_map -> fetched once, VMEM-resident.
            pl.BlockSpec((L, Hp), lambda i: (0, 0)),
            pl.BlockSpec((1, Hp), lambda i: (0, 0)),
            pl.BlockSpec((Hp, Op), lambda i: (0, 0)),
            pl.BlockSpec((1, Op), lambda i: (0, 0)),
        ],
        out_specs=pl.BlockSpec((TB, Op), lambda i: (i, 0)),
        compiler_params=pltpu.CompilerParams(
            dimension_semantics=("parallel",),   # batch tiles are independent
        ),
    )(xq, w1p, b1p, w2p, b2p)

    # Slice away batch / lane padding.
    return out_p[:B, :O]


def init_linear_params(key, in_features, out_features):
    """Deterministic init mirroring nn.Linear default: U(-1/sqrt(fan_in), +1/sqrt(fan_in)).
    Weight is returned pre-transposed as (in_features, out_features)."""
    kw, kb = jax.random.split(key)
    bound = 1.0 / jnp.sqrt(jnp.float32(in_features))
    w = jax.random.uniform(kw, (in_features, out_features), jnp.float32, -bound, bound)
    b = jax.random.uniform(kb, (1, out_features), jnp.float32, -bound, bound)
    return w, b


if __name__ == "__main__":
    latent_dim = 20
    hidden_dim = 32
    output_dim = 64   # small stand-in for 28*28
    batch = 8

    key = jax.random.PRNGKey(0)
    kx, k1, k2 = jax.random.split(key, 3)

    x = jax.random.normal(kx, (batch, latent_dim), jnp.float32)
    w1, b1 = init_linear_params(k1, latent_dim, hidden_dim)
    w2, b2 = init_linear_params(k2, hidden_dim, output_dim)

    fwd = jax.jit(decoder_forward)
    out = jax.block_until_ready(fwd(x, w1, b1, w2, b2))

    # Pure-JAX f32 reference (kernel uses bf16 MXU operands with f32 accumulation,
    # so use a modest tolerance).
    ref = jax.nn.sigmoid(jax.nn.sigmoid(x @ w1 + b1) @ w2 + b2)
    assert out.shape == (batch, output_dim)
    assert jnp.allclose(out, ref, atol=2e-2, rtol=2e-2), float(jnp.max(jnp.abs(out - ref)))

    print("KERNEL_OK")
</pallas_src>

<mosaic_0001>
module attributes {stable_mosaic.version = 11 : i64} {
  func.func @decoder_kernel(%arg0: i32, %arg1: memref<8x20xf32, #tpu.memory_space<vmem>>, %arg2: memref<20x128xbf16, #tpu.memory_space<vmem>>, %arg3: memref<1x128xf32, #tpu.memory_space<vmem>>, %arg4: memref<128x128xbf16, #tpu.memory_space<vmem>>, %arg5: memref<1x128xf32, #tpu.memory_space<vmem>>, %arg6: memref<8x128xf32, #tpu.memory_space<vmem>>) attributes {dimension_semantics = [#tpu.dimension_semantics<parallel>], iteration_bounds = array<i64: 1>, scalar_prefetch = 0 : i64, scratch_operands = 0 : i64, tpu.core_type = #tpu.core_type<tc>, window_params = [{transform_indices = @transform_0, window_bounds = array<i64: 8, 20>}, {pipeline_mode = #tpu.pipeline_mode<synchronous>, transform_indices = @transform_1, window_bounds = array<i64: 20, 128>}, {pipeline_mode = #tpu.pipeline_mode<synchronous>, transform_indices = @transform_2, window_bounds = array<i64: 1, 128>}, {pipeline_mode = #tpu.pipeline_mode<synchronous>, transform_indices = @transform_3, window_bounds = array<i64: 128, 128>}, {pipeline_mode = #tpu.pipeline_mode<synchronous>, transform_indices = @transform_4, window_bounds = array<i64: 1, 128>}, {transform_indices = @transform_5, window_bounds = array<i64: 8, 128>}]} {
    %c0 = arith.constant 0 : index
    %c0_0 = arith.constant 0 : index
    %0 = vector.load %arg1[%c0, %c0_0] : memref<8x20xf32, #tpu.memory_space<vmem>>, vector<8x20xf32>
    %1 = arith.truncf %0 : vector<8x20xf32> to vector<8x20xbf16>
    %c0_1 = arith.constant 0 : index
    %c0_2 = arith.constant 0 : index
    %2 = vector.load %arg2[%c0_1, %c0_2] : memref<20x128xbf16, #tpu.memory_space<vmem>>, vector<20x128xbf16>
    %cst = arith.constant dense<0.000000e+00> : vector<8x128xf32>
    %3 = tpu.matmul %1, %2, %cst {dimension_numbers = #tpu.dot_dimension_numbers<[1], [0], [0], [1], [0, 0, 1, 1], [], []>} : vector<8x20xbf16>, vector<20x128xbf16>, vector<8x128xf32> -> vector<8x128xf32>
    %c0_3 = arith.constant 0 : index
    %c0_4 = arith.constant 0 : index
    %4 = vector.load %arg3[%c0_3, %c0_4] : memref<1x128xf32, #tpu.memory_space<vmem>>, vector<1x128xf32>
    %5 = vector.broadcast %4 : vector<1x128xf32> to vector<8x128xf32>
    %6 = arith.addf %3, %5 : vector<8x128xf32>
    %cst_5 = arith.constant 0.000000e+00 : f32
    %7 = vector.broadcast %cst_5 : f32 to vector<8x128xf32>
    %8 = arith.subf %7, %6 : vector<8x128xf32>
    %9 = math.exp %8 : vector<8x128xf32>
    %cst_6 = arith.constant 1.000000e+00 : f32
    %10 = vector.broadcast %cst_6 : f32 to vector<8x128xf32>
    %11 = arith.addf %10, %9 : vector<8x128xf32>
    %cst_7 = arith.constant 1.000000e+00 : f32
    %12 = vector.broadcast %cst_7 : f32 to vector<8x128xf32>
    %13 = arith.divf %12, %11 : vector<8x128xf32>
    %14 = arith.truncf %13 : vector<8x128xf32> to vector<8x128xbf16>
    %c0_8 = arith.constant 0 : index
    %c0_9 = arith.constant 0 : index
    %15 = vector.load %arg4[%c0_8, %c0_9] : memref<128x128xbf16, #tpu.memory_space<vmem>>, vector<128x128xbf16>
    %cst_10 = arith.constant dense<0.000000e+00> : vector<8x128xf32>
    %16 = tpu.matmul %14, %15, %cst_10 {dimension_numbers = #tpu.dot_dimension_numbers<[1], [0], [0], [1], [0, 0, 1, 1], [], []>} : vector<8x128xbf16>, vector<128x128xbf16>, vector<8x128xf32> -> vector<8x128xf32>
    %c0_11 = arith.constant 0 : index
    %c0_12 = arith.constant 0 : index
    %17 = vector.load %arg5[%c0_11, %c0_12] : memref<1x128xf32, #tpu.memory_space<vmem>>, vector<1x128xf32>
    %18 = vector.broadcast %17 : vector<1x128xf32> to vector<8x128xf32>
    %19 = arith.addf %16, %18 : vector<8x128xf32>
    %cst_13 = arith.constant 0.000000e+00 : f32
    %20 = vector.broadcast %cst_13 : f32 to vector<8x128xf32>
    %21 = arith.subf %20, %19 : vector<8x128xf32>
    %22 = math.exp %21 : vector<8x128xf32>
    %cst_14 = arith.constant 1.000000e+00 : f32
    %23 = vector.broadcast %cst_14 : f32 to vector<8x128xf32>
    %24 = arith.addf %23, %22 : vector<8x128xf32>
    %cst_15 = arith.constant 1.000000e+00 : f32
    %25 = vector.broadcast %cst_15 : f32 to vector<8x128xf32>
    %26 = arith.divf %25, %24 : vector<8x128xf32>
    %c0_16 = arith.constant 0 : index
    %c0_17 = arith.constant 0 : index
    %27 = vector.load %arg6[%c0_16, %c0_17] : memref<8x128xf32, #tpu.memory_space<vmem>>, vector<8x128xf32>
    tpu.vector_store %arg6[%c0_16, %c0_17], %26 {strides = array<i32>} : memref<8x128xf32, #tpu.memory_space<vmem>>, vector<8x128xf32>,
    return
  }
  func.func @transform_0(%arg0: i32) -> (i32, i32) {
    %c0_i32 = arith.constant 0 : i32
    %c0_i32_0 = arith.constant 0 : i32
    return %arg0, %c0_i32 : i32, i32
  }
  func.func @transform_1(%arg0: i32) -> (i32, i32) {
    %c0_i32 = arith.constant 0 : i32
    %c0_i32_0 = arith.constant 0 : i32
    %c0_i32_1 = arith.constant 0 : i32
    return %c0_i32, %c0_i32_0 : i32, i32
  }
  func.func @transform_2(%arg0: i32) -> (i32, i32) {
    %c0_i32 = arith.constant 0 : i32
    %c0_i32_0 = arith.constant 0 : i32
    %c0_i32_1 = arith.constant 0 : i32
    return %c0_i32, %c0_i32_0 : i32, i32
  }
  func.func @transform_3(%arg0: i32) -> (i32, i32) {
    %c0_i32 = arith.constant 0 : i32
    %c0_i32_0 = arith.constant 0 : i32
    %c0_i32_1 = arith.constant 0 : i32
    return %c0_i32, %c0_i32_0 : i32, i32
  }
  func.func @transform_4(%arg0: i32) -> (i32, i32) {
    %c0_i32 = arith.constant 0 : i32
    %c0_i32_0 = arith.constant 0 : i32
    %c0_i32_1 = arith.constant 0 : i32
    return %c0_i32, %c0_i32_0 : i32, i32
  }
  func.func @transform_5(%arg0: i32) -> (i32, i32) {
    %c0_i32 = arith.constant 0 : i32
    %c0_i32_0 = arith.constant 0 : i32
    return %arg0, %c0_i32 : i32, i32
  }
}

</mosaic_0001>

<llo_original>
// kernel: decoder_forward.1
$region0: #{decoder_forward.1}
  #allocation0 [shape = 'u32[]', space=smem, size = 0x4, offset = 0x4, fixed_abs, tag = 'smem constant byte address 0x4 - core index']
  #allocation1 [shape = 'u32[144,128]{1,0:T(1,128)}', space=vmem, size = 0x12000, scoped, tag = 'internal scratch']
  %s0 = inlined_call_operand.vmem [shape: f32[8,20], index: 0, kind: input, shape index: {}]
  %s1 = inlined_call_operand.vmem [shape: bf16[20,128], index: 1, kind: input, shape index: {}]
  %s2 = inlined_call_operand.vmem [shape: f32[1,128], index: 2, kind: input, shape index: {}]
  %s3 = inlined_call_operand.vmem [shape: bf16[128,128], index: 3, kind: input, shape index: {}]
  %s4 = inlined_call_operand.vmem [shape: f32[1,128], index: 4, kind: input, shape index: {}]
  %s5 = inlined_call_operand.hbm [shape: f32[8,128], index: 5, kind: output, shape index: {}]
  %s6 = sld [smem:[#allocation0]]
  $region30: #{decoder_forward.1} parent=0
    _
  %s8 = ssub.s32 1, %s6
  %s9 = scalar_select 0, %s8, %s6
  $region1: #{decoder_forward.1} parent=0
    #allocation2 [shape = 'u8[4096]{0}', space=vmem, size = 0x1000, scoped, tag = 'output window, operand 0, single buffered']
    #allocation3 [shape = 's32[1]{0}', space=sflag, size = 0x4, scoped, tag = 'scoped memory for decoder_forward.1']
    %10 = vsyncpa [#allocation3], 0
    // Predicated region
    $region2: #{decoder_forward.1} parent=1 // pred_check
      _
    $region3: #{decoder_forward.1} parent=1 // pred_check_branch
      %12 = sbr.rel (0) target = $region5
    $region4: #{decoder_forward.1} parent=1 // pred_region
      _
    $region5: #{decoder_forward.1} parent=1 // pred_fallthru
      _
    // Predicated region
    $region6: #{decoder_forward.1} parent=1 // pred_check
      _
    $region7: #{decoder_forward.1} parent=1 // pred_check_branch
      %14 = sbr.rel (0) target = $region9
    $region8: #{decoder_forward.1} parent=1 // pred_region
      _
    $region9: #{decoder_forward.1} parent=1 // pred_fallthru
      _
    // Predicated region
    $region10: #{decoder_forward.1} parent=1 // pred_check
      _
    $region11: #{decoder_forward.1} parent=1 // pred_check_branch
      %16 = sbr.rel (0) target = $region13
    $region12: #{decoder_forward.1} parent=1 // pred_region
      _
    $region13: #{decoder_forward.1} parent=1 // pred_fallthru
      _
    // Predicated region
    $region14: #{decoder_forward.1} parent=1 // pred_check
      _
    $region15: #{decoder_forward.1} parent=1 // pred_check_branch
      %18 = sbr.rel (0) target = $region17
    $region16: #{decoder_forward.1} parent=1 // pred_region
      _
    $region17: #{decoder_forward.1} parent=1 // pred_fallthru
      _
    // Predicated region
    $region18: #{decoder_forward.1} parent=1 // pred_check
      _
    $region19: #{decoder_forward.1} parent=1 // pred_check_branch
      %20 = sbr.rel (0) target = $region21
    $region20: #{decoder_forward.1} parent=1 // pred_region
      _
    $region21: #{decoder_forward.1} parent=1 // pred_fallthru
      _
    %v22 = vld [vmem:[%s0] sm:$0xff]
    %v23 = vpack.c.bf16 %v22, %v22
    %v24 = vld [vmem:[%s1] sm:$0xf]
    %v25 = vld [vmem:[%s1 + $0x4] sm:$0xf]
    %v26 = vld [vmem:[%s1 + $0x8] sm:$0x3]
    %v27 = vld [vmem:[%s2] sm:$0x1]
    %v29 = vlaneseq
    %v30 = vshrl.u32 %v29, 7
    %v31 = vsub.s32 0, %v30
    %v32 = vrot.slane %v27, %v31
    %v37 = vunpack.c.l.b16 %v24
    %v38 = vunpack.c.l.b16 %v25
    %v39 = vunpack.c.l.b16 %v26
    %v40 = vpack.c.b16 %v38, %v37
    %v41 = vpack.c.b16 %v39, %v39
    %vm43 = vcmask 162816
    %v45 = vsel %vm43, %v23, 0
    %vm47 = vcmask 1041408
    %v49 = vsel %vm47, %v41, 0
    %51 = vmatprep.subr.bf16.mxu0 0
    %52 = vmatpush1.bf16.msra.mxu0 %v40
    %53 = vmatprep.subr.bf16.mxu0 0
    %54 = vmatpush1.bf16.msra.mxu0 %v49
    %55 = vmatprep.subr.bf16.mxu0 0
    %56 = vmatpush1.bf16.msra.mxu0 0
    %57 = vmatprep.subr.bf16.mxu0 0
    %58 = vmatpush1.bf16.msra.mxu0 0
    %59 = vmatprep.subr.bf16.mxu0 0
    %60 = vmatpush1.bf16.msra.mxu0 0
    %61 = vmatprep.subr.bf16.mxu0 0
    %62 = vmatpush1.bf16.msra.mxu0 0
    %63 = vmatprep.subr.bf16.mxu0 0
    %64 = vmatpush1.bf16.msra.mxu0 0
    %65 = vmatprep.subr.bf16.mxu0 0
    %66 = vmatpush1.bf16.msra.mxu0 0
    %67 = vmatprep.subr.bf16.mxu0 0
    %68 = vmatpush1.bf16.msra.mxu0 0
    %69 = vmatprep.subr.bf16.mxu0 0
    %70 = vmatpush1.bf16.msra.mxu0 0
    %71 = vmatprep.subr.bf16.mxu0 0
    %72 = vmatpush1.bf16.msra.mxu0 0
    %73 = vmatprep.subr.bf16.mxu0 0
    %74 = vmatpush1.bf16.msra.mxu0 0
    %75 = vmatprep.subr.bf16.mxu0 0
    %76 = vmatpush1.bf16.msra.mxu0 0
    %77 = vmatprep.subr.bf16.mxu0 0
    %78 = vmatpush1.bf16.msra.mxu0 0
    %79 = vmatprep.subr.bf16.mxu0 0
    %80 = vmatpush1.bf16.msra.mxu0 0
    %81 = vmatprep.subr.bf16.mxu0 0
    %82 = vmatpush1.bf16.msra.mxu0 0
    %83 = vmatprep.mubr.bf16.mxu0 0
    %84 = vmatmul.mubr.bf16.gmra.mrb[0].mxu0 %v45
    %v85 = vpop.f32.mrb[0].mxu0
    %v86 = vadd.f32 %v32, %v85
    %v87 = vpop.f32.mrb[0].mxu0
    %v88 = vpop.f32.mrb[0].mxu0
    %v89 = vpop.f32.mrb[0].mxu0
    %90 = vdwg.mxu0
    %v91 = vsub.f32 0.0, %v86
    %v92 = vmul.f32 %v91, 1.442695
    %v93 = vpow.pop %v92
    %v94 = vadd.f32 %v93, 1.0
    %v95 = vrcp.pop %v94
    %v96 = vmul.f32 1.0, %v95
    %v97 = vpack.c.bf16 %v96, %v96
    %v98 = vld [vmem:[%s3] sm:$0xf]
    %v99 = vld [vmem:[%s3 + $0x4] sm:$0xf]
    %v100 = vld [vmem:[%s3 + $0x8] sm:$0xf]
    %v101 = vld [vmem:[%s3 + $0xc] sm:$0xf]
    %v102 = vld [vmem:[%s3 + $0x10] sm:$0xf]
    %v103 = vld [vmem:[%s3 + $0x14] sm:$0xf]
    %v104 = vld [vmem:[%s3 + $0x18] sm:$0xf]
    %v105 = vld [vmem:[%s3 + $0x1c] sm:$0xf]
    %v106 = vld [vmem:[%s3 + $0x20] sm:$0xf]
    %v107 = vld [vmem:[%s3 + $0x24] sm:$0xf]
    %v108 = vld [vmem:[%s3 + $0x28] sm:$0xf]
    %v109 = vld [vmem:[%s3 + $0x2c] sm:$0xf]
    %v110 = vld [vmem:[%s3 + $0x30] sm:$0xf]
    %v111 = vld [vmem:[%s3 + $0x34] sm:$0xf]
    %v112 = vld [vmem:[%s3 + $0x38] sm:$0xf]
    %v113 = vld [vmem:[%s3 + $0x3c] sm:$0xf]
    %v114 = vld [vmem:[%s4] sm:$0x1]
    %v116 = vlaneseq
    %v117 = vshrl.u32 %v116, 7
    %v118 = vsub.s32 0, %v117
    %v119 = vrot.slane %v114, %v118
    %v137 = vunpack.c.l.b16 %v98
    %v138 = vunpack.c.l.b16 %v99
    %v139 = vunpack.c.l.b16 %v100
    %v140 = vunpack.c.l.b16 %v101
    %v141 = vunpack.c.l.b16 %v102
    %v142 = vunpack.c.l.b16 %v103
    %v143 = vunpack.c.l.b16 %v104
    %v144 = vunpack.c.l.b16 %v105
    %v145 = vunpack.c.l.b16 %v106
    %v146 = vunpack.c.l.b16 %v107
    %v147 = vunpack.c.l.b16 %v108
    %v148 = vunpack.c.l.b16 %v109
    %v149 = vunpack.c.l.b16 %v110
    %v150 = vunpack.c.l.b16 %v111
    %v151 = vunpack.c.l.b16 %v112
    %v152 = vunpack.c.l.b16 %v113
    %v153 = vpack.c.b16 %v138, %v137
    %v154 = vpack.c.b16 %v140, %v139
    %v155 = vpack.c.b16 %v142, %v141
    %v156 = vpack.c.b16 %v144, %v143
    %v157 = vpack.c.b16 %v146, %v145
    %v158 = vpack.c.b16 %v148, %v147
    %v159 = vpack.c.b16 %v150, %v149
    %v160 = vpack.c.b16 %v152, %v151
    %169 = vmatprep.subr.bf16.mxu0 0
    %170 = vmatpush1.bf16.msra.mxu0 %v153
    %171 = vmatprep.subr.bf16.mxu0 0
    %172 = vmatpush1.bf16.msra.mxu0 %v154
    %173 = vmatprep.subr.bf16.mxu0 0
    %174 = vmatpush1.bf16.msra.mxu0 %v155
    %175 = vmatprep.subr.bf16.mxu0 0
    %176 = vmatpush1.bf16.msra.mxu0 %v156
    %177 = vmatprep.subr.bf16.mxu0 0
    %178 = vmatpush1.bf16.msra.mxu0 %v157
    %179 = vmatprep.subr.bf16.mxu0 0
    %180 = vmatpush1.bf16.msra.mxu0 %v158
    %181 = vmatprep.subr.bf16.mxu0 0
    %182 = vmatpush1.bf16.msra.mxu0 %v159
    %183 = vmatprep.subr.bf16.mxu0 0
    %184 = vmatpush1.bf16.msra.mxu0 %v160
    %185 = vmatprep.subr.bf16.mxu0 0
    %186 = vmatpush1.bf16.msra.mxu0 0
    %187 = vmatprep.subr.bf16.mxu0 0
    %188 = vmatpush1.bf16.msra.mxu0 0
    %189 = vmatprep.subr.bf16.mxu0 0
    %190 = vmatpush1.bf16.msra.mxu0 0
    %191 = vmatprep.subr.bf16.mxu0 0
    %192 = vmatpush1.bf16.msra.mxu0 0
    %193 = vmatprep.subr.bf16.mxu0 0
    %194 = vmatpush1.bf16.msra.mxu0 0
    %195 = vmatprep.subr.bf16.mxu0 0
    %196 = vmatpush1.bf16.msra.mxu0 0
    %197 = vmatprep.subr.bf16.mxu0 0
    %198 = vmatpush1.bf16.msra.mxu0 0
    %199 = vmatprep.subr.bf16.mxu0 0
    %200 = vmatpush1.bf16.msra.mxu0 0
    %201 = vmatprep.mubr.bf16.mxu0 0
    %202 = vmatmul.mubr.bf16.gmra.mrb[0].mxu0 %v97
    %v203 = vpop.f32.mrb[0].mxu0
    %v204 = vadd.f32 %v119, %v203
    %v205 = vpop.f32.mrb[0].mxu0
    %v206 = vpop.f32.mrb[0].mxu0
    %v207 = vpop.f32.mrb[0].mxu0
    %208 = vdwg.mxu0
    %v209 = vsub.f32 0.0, %v204
    %v210 = vmul.f32 %v209, 1.442695
    %v211 = vpow.pop %v210
    %v212 = vadd.f32 %v211, 1.0
    %v213 = vrcp.pop %v212
    %v214 = vmul.f32 1.0, %v213
    %215 = vst [vmem:[#allocation2] sm:$0xff] %v214
    // Predicated region
    $region22: #{decoder_forward.1} parent=1 // pred_check
      _
    $region23: #{decoder_forward.1} parent=1 // pred_check_branch
      %217 = sbr.rel (0) target = $region25
    $region24: #{decoder_forward.1} parent=1 // pred_region
      %s219 = ssub.s32 128, 128
      %220 = vsyncadd [#allocation3], %s219
      %s222 = sshll.u32 [#allocation2], 4
      %s223 = int_to_ptr.vmem [resolvable:$true] %s222
      %225 = dma.vmem_to_hbm [thread:$0]  %s223, 128, %s5, [#allocation3]
    $region25: #{decoder_forward.1} parent=1 // pred_fallthru
      _
    // Predicated region
    $region26: #{decoder_forward.1} parent=1 // pred_check
      _
    $region27: #{decoder_forward.1} parent=1 // pred_check_branch
      %227 = sbr.rel (0) target = $region29
    $region28: #{decoder_forward.1} parent=1 // pred_region
      %228 = dma.done [#allocation3], 128
    $region29: #{decoder_forward.1} parent=1 // pred_fallthru
      _
    %229 = vsyncpa [#allocation3], 1

</llo_original>
